<compile_context>
chip_gen: v7x
topology: tpu7x:2x2x1
jax: 0.10.0
libtpu: 0.0.40
codegen_flags: <defaults>
</compile_context>

<pallas_src>
import jax
import jax.numpy as jnp
from jax.experimental import pallas as pl
from jax.experimental.pallas import tpu as pltpu

# ---- model config ----
NUM_LAYERS = 2
IN_CHANNELS = 16
HIDDEN = 32
OUT_CHANNELS = 8
OUT_PAD = 128              # lane-dense padded logits width
N_NODES = 16
NUM_GRAPHS = 2
GP = 8                     # graph rows padded to a full sublane tile
EPS = 0.0                  # GINConv eps
BN_EPS = 1e-5              # torch BatchNorm1d default
NEG_BIG = -1e30

# ---- data slab layout (f32, [DATA_ROWS, 128]); offsets 8-aligned ----
ROW_X = 0                              # [N_NODES, IN_CHANNELS]
ROW_MM = ROW_X + N_NODES               # 16: mean-pool mask (pre-scaled 1/cnt) [GP, N]
ROW_MT = ROW_MM + GP                   # 24: {0,1} mask transposed [N, GP]
ROW_Y = ROW_MT + N_NODES               # 40: one-hot labels [GP, OUT_PAD]
DATA_ROWS = ROW_Y + GP                 # 48

# ---- bias/param vec slab layout (f32, [8, 128]) ----
ROW_B1_0, ROW_B2_0, ROW_GAMMA, ROW_BETA, ROW_B1_1, ROW_B2_1, ROW_B1F, ROW_B2F = range(8)
VEC_ROWS = 8

# ---- weight slab layout (bf16, [W_ROWS, 128]); row offsets 16-aligned ----
ROW_W1_0 = 0                           # [IN_CHANNELS, HIDDEN]
ROW_W2_0 = 16                          # [HIDDEN, HIDDEN]
ROW_W1_1 = 48
ROW_W2_1 = 80
ROW_W1A = 112                          # fc1 half acting on mean_x
ROW_W1B = 144                          # fc1 half acting on max_x
ROW_W2F = 176                          # [HIDDEN, OUT_PAD] (zero cols past OUT_CHANNELS)
W_ROWS = 208


# ---------------------------------------------------------------------------
# Single fused kernel: conv0 -> relu -> BN -> conv1 -> relu -> pool -> head
#                      -> cross-entropy.
# ---------------------------------------------------------------------------
def gnn_fused_kernel(adj_ref, data_ref, vec_ref, w_ref, logits_ref, loss_ref):
    adj = adj_ref[...]                                      # [N, N] bf16

    def vec(row, width=HIDDEN):                             # [1, width] f32 ref view
        return vec_ref[row:row + 1, 0:width]

    def gin_layer(h, w1_row, w1_rows, b1_row, w2_row, b2_row):
        w1 = w_ref[w1_row:w1_row + w1_rows, 0:HIDDEN]       # bf16
        w2 = w_ref[w2_row:w2_row + HIDDEN, 0:HIDDEN]        # bf16
        # agg = (1 + eps) * h + A @ h    (bf16 MXU operands, f32 accumulate)
        agg = (1.0 + EPS) * h + jnp.dot(
            adj, h.astype(jnp.bfloat16), preferred_element_type=jnp.float32)
        # GIN MLP: Linear -> ReLU -> Linear, then outer F.relu (get_node_rep)
        z = jnp.maximum(
            jnp.dot(agg.astype(jnp.bfloat16), w1,
                    preferred_element_type=jnp.float32) + vec(b1_row), 0.0)
        return jnp.maximum(
            jnp.dot(z.astype(jnp.bfloat16), w2,
                    preferred_element_type=jnp.float32) + vec(b2_row), 0.0)

    # ---- layer 0: conv + relu (+ dropout p=0) + BatchNorm (batch stats) ----
    h = data_ref[ROW_X:ROW_X + N_NODES, 0:IN_CHANNELS]      # [N, Cin] f32
    h = gin_layer(h, ROW_W1_0, IN_CHANNELS, ROW_B1_0, ROW_W2_0, ROW_B2_0)
    mu = jnp.mean(h, axis=0, keepdims=True)
    var = jnp.mean((h - mu) ** 2, axis=0, keepdims=True)
    h = vec(ROW_GAMMA) * (h - mu) * jax.lax.rsqrt(var + BN_EPS) + vec(ROW_BETA)

    # ---- layer 1 (last): conv + relu, no BN; JK == 'last' -> node_x = h ----
    h = gin_layer(h, ROW_W1_1, HIDDEN, ROW_B1_1, ROW_W2_1, ROW_B2_1)  # [N, H], >= 0

    # ---- global mean / max pool (no [G, N, H] broadcast) ----
    mask_mean = data_ref[ROW_MM:ROW_MM + GP, 0:N_NODES].astype(jnp.bfloat16)
    mean_x = jnp.dot(mask_mean, h.astype(jnp.bfloat16),
                     preferred_element_type=jnp.float32)             # [GP, H]
    mask_t = data_ref[ROW_MT:ROW_MT + N_NODES, 0:GP]                 # [N, GP] f32
    rows = []
    for g in range(NUM_GRAPHS):                                      # static, tiny G
        keep = mask_t[:, g:g + 1] > 0.0                              # [N, 1]
        rows.append(jnp.max(jnp.where(keep, h, NEG_BIG), axis=0, keepdims=True))
    if GP > NUM_GRAPHS:
        rows.append(jnp.zeros((GP - NUM_GRAPHS, HIDDEN), jnp.float32))
    # h >= 0 (post-ReLU), so clamping at 0 is exact for non-empty graphs and
    # keeps empty / padded graph rows finite.
    max_x = jnp.maximum(jnp.concatenate(rows, axis=0), 0.0)          # [GP, H]

    # ---- graph_pred_linear head: fc1 split over (mean | max) halves ----
    w1a = w_ref[ROW_W1A:ROW_W1A + HIDDEN, 0:HIDDEN]
    w1b = w_ref[ROW_W1B:ROW_W1B + HIDDEN, 0:HIDDEN]
    w2f = w_ref[ROW_W2F:ROW_W2F + HIDDEN, :]
    hh = jnp.maximum(
        jnp.dot(mean_x.astype(jnp.bfloat16), w1a, preferred_element_type=jnp.float32)
        + jnp.dot(max_x.astype(jnp.bfloat16), w1b, preferred_element_type=jnp.float32)
        + vec(ROW_B1F), 0.0)                                          # [GP, H]
    logits = (jnp.dot(hh.astype(jnp.bfloat16), w2f,
                      preferred_element_type=jnp.float32)
              + vec(ROW_B2F, OUT_PAD))                                # [GP, OUT_PAD]
    logits_ref[...] = logits                                          # full (8,128) vst

    # ---- CrossEntropyLoss (pad cols hold -1e30 bias; pad rows have y == 0) ----
    m = jnp.max(logits, axis=-1, keepdims=True)
    lse = m + jnp.log(jnp.sum(jnp.exp(logits - m), axis=-1, keepdims=True))
    y = data_ref[ROW_Y:ROW_Y + GP, :]                                 # [GP, OUT_PAD]
    nll = -jnp.sum(y * (logits - lse), axis=-1, keepdims=True)        # [GP, 1]
    loss_ref[0, 0] = jnp.sum(nll) * (1.0 / NUM_GRAPHS)


# ---------------------------------------------------------------------------
# Wrapper: pack inputs/params into lane-padded slabs and call the kernel.
# ---------------------------------------------------------------------------
def pack_data(x, mask_mean, mask_t, y_onehot):
    d = jnp.zeros((DATA_ROWS, 128), jnp.float32)
    d = d.at[ROW_X:ROW_X + N_NODES, :IN_CHANNELS].set(x)
    d = d.at[ROW_MM:ROW_MM + GP, :N_NODES].set(mask_mean)
    d = d.at[ROW_MT:ROW_MT + N_NODES, :GP].set(mask_t)
    d = d.at[ROW_Y:ROW_Y + GP, :OUT_PAD].set(y_onehot)
    return d


def pack_params(params):
    (w1_0, b1_0, w2_0, b2_0), (w1_1, b1_1, w2_1, b2_1) = params["conv"]
    gamma, beta = params["bn"][0]                       # BN only on non-final layers
    w1a, w1b, b1f, w2f, b2f = params["head"]

    v = jnp.zeros((VEC_ROWS, 128), jnp.float32)
    v = v.at[ROW_B1_0, :HIDDEN].set(b1_0)
    v = v.at[ROW_B2_0, :HIDDEN].set(b2_0)
    v = v.at[ROW_GAMMA, :HIDDEN].set(gamma)
    v = v.at[ROW_BETA, :HIDDEN].set(beta)
    v = v.at[ROW_B1_1, :HIDDEN].set(b1_1)
    v = v.at[ROW_B2_1, :HIDDEN].set(b2_1)
    v = v.at[ROW_B1F, :HIDDEN].set(b1f)
    # fc2 bias row: real bias on first OUT_CHANNELS lanes, -1e30 on pads so the
    # padded logits vanish from softmax and the store stays lane-dense.
    b2f_row = jnp.full((OUT_PAD,), NEG_BIG, jnp.float32).at[:OUT_CHANNELS].set(b2f)
    v = v.at[ROW_B2F, :].set(b2f_row)

    w = jnp.zeros((W_ROWS, 128), jnp.float32)
    w = w.at[ROW_W1_0:ROW_W1_0 + IN_CHANNELS, :HIDDEN].set(w1_0)
    w = w.at[ROW_W2_0:ROW_W2_0 + HIDDEN, :HIDDEN].set(w2_0)
    w = w.at[ROW_W1_1:ROW_W1_1 + HIDDEN, :HIDDEN].set(w1_1)
    w = w.at[ROW_W2_1:ROW_W2_1 + HIDDEN, :HIDDEN].set(w2_1)
    w = w.at[ROW_W1A:ROW_W1A + HIDDEN, :HIDDEN].set(w1a)
    w = w.at[ROW_W1B:ROW_W1B + HIDDEN, :HIDDEN].set(w1b)
    w = w.at[ROW_W2F:ROW_W2F + HIDDEN, :OUT_CHANNELS].set(w2f)
    return v, w.astype(jnp.bfloat16)                    # halve weight DMA bytes


def gnn_forward(adj_bf16, data_slab, vec_slab, w_slab):
    vmem = pl.BlockSpec(memory_space=pltpu.MemorySpace.VMEM)
    smem = pl.BlockSpec(memory_space=pltpu.MemorySpace.SMEM)
    logits_pad, loss = pl.pallas_call(
        gnn_fused_kernel,
        out_shape=(jax.ShapeDtypeStruct((GP, OUT_PAD), jnp.float32),
                   jax.ShapeDtypeStruct((1, 1), jnp.float32)),
        in_specs=[vmem, vmem, vmem, vmem],
        out_specs=(vmem, smem),
    )(adj_bf16, data_slab, vec_slab, w_slab)
    return logits_pad[:NUM_GRAPHS, :OUT_CHANNELS], loss[0, 0]


def init_params(key):
    def dense(k, shape, scale=0.1):
        return scale * jax.random.normal(k, shape, jnp.float32)

    keys = jax.random.split(key, 12)
    ki = 0
    conv = []
    for layer in range(NUM_LAYERS):
        in_dim = IN_CHANNELS if layer == 0 else HIDDEN
        w1 = dense(keys[ki], (in_dim, HIDDEN)); ki += 1
        b1 = dense(keys[ki], (HIDDEN,)); ki += 1
        w2 = dense(keys[ki], (HIDDEN, HIDDEN)); ki += 1
        b2 = dense(keys[ki], (HIDDEN,)); ki += 1
        conv.append((w1, b1, w2, b2))
    bn = [(jnp.ones((HIDDEN,), jnp.float32), jnp.zeros((HIDDEN,), jnp.float32))
          for _ in range(NUM_LAYERS)]
    # Head fc1 split into halves acting on mean_x / max_x (== concat @ W1).
    w1a = dense(keys[ki], (HIDDEN, HIDDEN)); ki += 1
    w1b = dense(keys[ki], (HIDDEN, HIDDEN)); ki += 1
    b1f = jnp.zeros((HIDDEN,), jnp.float32)
    w2f = dense(keys[ki], (HIDDEN, OUT_CHANNELS)); ki += 1
    b2f = jnp.zeros((OUT_CHANNELS,), jnp.float32)
    return {"conv": conv, "bn": bn, "head": (w1a, w1b, b1f, w2f, b2f)}


if __name__ == "__main__":
    key = jax.random.PRNGKey(0)
    k_x, k_src, k_dst, k_p = jax.random.split(key, 4)

    N, E, G = N_NODES, 40, NUM_GRAPHS
    x = jax.random.normal(k_x, (N, IN_CHANNELS), jnp.float32)

    # Random graph; edge_index[0]=src (j), edge_index[1]=dst (i); GIN sums x_j into i.
    src = jax.random.randint(k_src, (E,), 0, N)
    dst = jax.random.randint(k_dst, (E,), 0, N)
    adj = jnp.zeros((N, N), jnp.float32).at[dst, src].add(1.0)    # A[i, j]
    adj_bf16 = adj.astype(jnp.bfloat16)      # exact: small integer edge counts

    # Batch assignment: nodes 0..7 -> graph 0, 8..15 -> graph 1.
    batch = jnp.repeat(jnp.arange(G), N // G)
    mask = (batch[None, :] == jnp.arange(G)[:, None]).astype(jnp.float32)   # [G, N]
    counts = jnp.sum(mask, axis=1, keepdims=True)
    mask_mean = mask / jnp.maximum(counts, 1.0)                             # [G, N]
    mask_mean = jnp.concatenate(
        [mask_mean, jnp.zeros((GP - G, N), jnp.float32)], axis=0)           # [GP, N]
    mask_t = jnp.concatenate(
        [mask.T, jnp.zeros((N, GP - G), jnp.float32)], axis=1)              # [N, GP]

    y = jnp.array([1, 3], dtype=jnp.int32)
    y_onehot = jnp.concatenate(
        [jax.nn.one_hot(y, OUT_PAD, dtype=jnp.float32),
         jnp.zeros((GP - G, OUT_PAD), jnp.float32)], axis=0)                # [GP, OUT_PAD]

    params = init_params(k_p)
    vec_slab, w_slab = pack_params(params)
    data_slab = pack_data(x, mask_mean, mask_t, y_onehot)

    logits, loss = jax.jit(gnn_forward)(adj_bf16, data_slab, vec_slab, w_slab)
    jax.block_until_ready((logits, loss))
    assert logits.shape == (G, OUT_CHANNELS)
    assert bool(jnp.isfinite(loss))
    assert bool(jnp.all(jnp.isfinite(logits)))
    print("KERNEL_OK")
</pallas_src>

<mosaic_0001>
module attributes {stable_mosaic.version = 11 : i64} {
  func.func @gnn_fused_kernel(%arg0: memref<16x16xbf16, #tpu.memory_space<vmem>>, %arg1: memref<48x128xf32, #tpu.memory_space<vmem>>, %arg2: memref<8x128xf32, #tpu.memory_space<vmem>>, %arg3: memref<208x128xbf16, #tpu.memory_space<vmem>>, %arg4: memref<8x128xf32, #tpu.memory_space<vmem>>, %arg5: memref<1x1xf32, #tpu.memory_space<smem>>) attributes {dimension_semantics = [], scalar_prefetch = 0 : i64, scratch_operands = 0 : i64, tpu.core_type = #tpu.core_type<tc>} {
    %c0 = arith.constant 0 : index
    %c0_0 = arith.constant 0 : index
    %0 = vector.load %arg0[%c0, %c0_0] : memref<16x16xbf16, #tpu.memory_space<vmem>>, vector<16x16xbf16>
    %c0_1 = arith.constant 0 : index
    %c0_2 = arith.constant 0 : index
    %1 = vector.load %arg1[%c0_1, %c0_2] : memref<48x128xf32, #tpu.memory_space<vmem>>, vector<16x16xf32>
    %c0_3 = arith.constant 0 : index
    %c0_4 = arith.constant 0 : index
    %2 = vector.load %arg3[%c0_3, %c0_4] : memref<208x128xbf16, #tpu.memory_space<vmem>>, vector<16x32xbf16>
    %c16 = arith.constant 16 : index
    %c0_5 = arith.constant 0 : index
    %3 = vector.load %arg3[%c16, %c0_5] : memref<208x128xbf16, #tpu.memory_space<vmem>>, vector<32x32xbf16>
    %cst = arith.constant 1.000000e+00 : f32
    %4 = vector.broadcast %cst : f32 to vector<16x16xf32>
    %5 = arith.mulf %4, %1 : vector<16x16xf32>
    %6 = arith.truncf %1 : vector<16x16xf32> to vector<16x16xbf16>
    %cst_6 = arith.constant dense<0.000000e+00> : vector<16x16xf32>
    %7 = tpu.matmul %0, %6, %cst_6 {dimension_numbers = #tpu.dot_dimension_numbers<[1], [0], [0], [1], [0, 0, 1, 1], [], []>} : vector<16x16xbf16>, vector<16x16xbf16>, vector<16x16xf32> -> vector<16x16xf32>
    %8 = arith.addf %5, %7 : vector<16x16xf32>
    %9 = arith.truncf %8 : vector<16x16xf32> to vector<16x16xbf16>
    %cst_7 = arith.constant dense<0.000000e+00> : vector<16x32xf32>
    %10 = tpu.matmul %9, %2, %cst_7 {dimension_numbers = #tpu.dot_dimension_numbers<[1], [0], [0], [1], [0, 0, 1, 1], [], []>} : vector<16x16xbf16>, vector<16x32xbf16>, vector<16x32xf32> -> vector<16x32xf32>
    %c0_8 = arith.constant 0 : index
    %c0_9 = arith.constant 0 : index
    %11 = vector.load %arg2[%c0_8, %c0_9] : memref<8x128xf32, #tpu.memory_space<vmem>>, vector<1x32xf32>
    %12 = vector.broadcast %11 : vector<1x32xf32> to vector<16x32xf32>
    %13 = arith.addf %10, %12 : vector<16x32xf32>
    %cst_10 = arith.constant 0.000000e+00 : f32
    %14 = vector.broadcast %cst_10 : f32 to vector<16x32xf32>
    %15 = arith.maximumf %13, %14 : vector<16x32xf32>
    %16 = arith.truncf %15 : vector<16x32xf32> to vector<16x32xbf16>
    %cst_11 = arith.constant dense<0.000000e+00> : vector<16x32xf32>
    %17 = tpu.matmul %16, %3, %cst_11 {dimension_numbers = #tpu.dot_dimension_numbers<[1], [0], [0], [1], [0, 0, 1, 1], [], []>} : vector<16x32xbf16>, vector<32x32xbf16>, vector<16x32xf32> -> vector<16x32xf32>
    %c1 = arith.constant 1 : index
    %c0_12 = arith.constant 0 : index
    %18 = vector.load %arg2[%c1, %c0_12] : memref<8x128xf32, #tpu.memory_space<vmem>>, vector<1x32xf32>
    %19 = vector.broadcast %18 : vector<1x32xf32> to vector<16x32xf32>
    %20 = arith.addf %17, %19 : vector<16x32xf32>
    %cst_13 = arith.constant 0.000000e+00 : f32
    %21 = vector.broadcast %cst_13 : f32 to vector<16x32xf32>
    %22 = arith.maximumf %20, %21 : vector<16x32xf32>
    %cst_14 = arith.constant dense<0.000000e+00> : vector<32xf32>
    %23 = vector.multi_reduction <add>, %22, %cst_14 [0] : vector<16x32xf32> to vector<32xf32>
    %24 = vector.shape_cast %23 : vector<32xf32> to vector<1x32xf32>
    %cst_15 = arith.constant 1.600000e+01 : f32
    %25 = vector.broadcast %cst_15 : f32 to vector<1x32xf32>
    %26 = arith.divf %24, %25 : vector<1x32xf32>
    %27 = vector.broadcast %26 : vector<1x32xf32> to vector<16x32xf32>
    %28 = arith.subf %22, %27 : vector<16x32xf32>
    %29 = arith.mulf %28, %28 : vector<16x32xf32>
    %cst_16 = arith.constant dense<0.000000e+00> : vector<32xf32>
    %30 = vector.multi_reduction <add>, %29, %cst_16 [0] : vector<16x32xf32> to vector<32xf32>
    %31 = vector.shape_cast %30 : vector<32xf32> to vector<1x32xf32>
    %cst_17 = arith.constant 1.600000e+01 : f32
    %32 = vector.broadcast %cst_17 : f32 to vector<1x32xf32>
    %33 = arith.divf %31, %32 : vector<1x32xf32>
    %c2 = arith.constant 2 : index
    %c0_18 = arith.constant 0 : index
    %34 = vector.load %arg2[%c2, %c0_18] : memref<8x128xf32, #tpu.memory_space<vmem>>, vector<1x32xf32>
    %35 = vector.broadcast %26 : vector<1x32xf32> to vector<16x32xf32>
    %36 = arith.subf %22, %35 : vector<16x32xf32>
    %37 = vector.broadcast %34 : vector<1x32xf32> to vector<16x32xf32>
    %38 = arith.mulf %37, %36 : vector<16x32xf32>
    %cst_19 = arith.constant 9.99999974E-6 : f32
    %39 = vector.broadcast %cst_19 : f32 to vector<1x32xf32>
    %40 = arith.addf %33, %39 : vector<1x32xf32>
    %41 = math.rsqrt %40 : vector<1x32xf32>
    %42 = vector.broadcast %41 : vector<1x32xf32> to vector<16x32xf32>
    %43 = arith.mulf %38, %42 : vector<16x32xf32>
    %c3 = arith.constant 3 : index
    %c0_20 = arith.constant 0 : index
    %44 = vector.load %arg2[%c3, %c0_20] : memref<8x128xf32, #tpu.memory_space<vmem>>, vector<1x32xf32>
    %45 = vector.broadcast %44 : vector<1x32xf32> to vector<16x32xf32>
    %46 = arith.addf %43, %45 : vector<16x32xf32>
    %c48 = arith.constant 48 : index
    %c0_21 = arith.constant 0 : index
    %47 = vector.load %arg3[%c48, %c0_21] : memref<208x128xbf16, #tpu.memory_space<vmem>>, vector<32x32xbf16>
    %c80 = arith.constant 80 : index
    %c0_22 = arith.constant 0 : index
    %48 = vector.load %arg3[%c80, %c0_22] : memref<208x128xbf16, #tpu.memory_space<vmem>>, vector<32x32xbf16>
    %cst_23 = arith.constant 1.000000e+00 : f32
    %49 = vector.broadcast %cst_23 : f32 to vector<16x32xf32>
    %50 = arith.mulf %49, %46 : vector<16x32xf32>
    %51 = arith.truncf %46 : vector<16x32xf32> to vector<16x32xbf16>
    %cst_24 = arith.constant dense<0.000000e+00> : vector<16x32xf32>
    %52 = tpu.matmul %0, %51, %cst_24 {dimension_numbers = #tpu.dot_dimension_numbers<[1], [0], [0], [1], [0, 0, 1, 1], [], []>} : vector<16x16xbf16>, vector<16x32xbf16>, vector<16x32xf32> -> vector<16x32xf32>
    %53 = arith.addf %50, %52 : vector<16x32xf32>
    %54 = arith.truncf %53 : vector<16x32xf32> to vector<16x32xbf16>
    %cst_25 = arith.constant dense<0.000000e+00> : vector<16x32xf32>
    %55 = tpu.matmul %54, %47, %cst_25 {dimension_numbers = #tpu.dot_dimension_numbers<[1], [0], [0], [1], [0, 0, 1, 1], [], []>} : vector<16x32xbf16>, vector<32x32xbf16>, vector<16x32xf32> -> vector<16x32xf32>
    %c4 = arith.constant 4 : index
    %c0_26 = arith.constant 0 : index
    %56 = vector.load %arg2[%c4, %c0_26] : memref<8x128xf32, #tpu.memory_space<vmem>>, vector<1x32xf32>
    %57 = vector.broadcast %56 : vector<1x32xf32> to vector<16x32xf32>
    %58 = arith.addf %55, %57 : vector<16x32xf32>
    %cst_27 = arith.constant 0.000000e+00 : f32
    %59 = vector.broadcast %cst_27 : f32 to vector<16x32xf32>
    %60 = arith.maximumf %58, %59 : vector<16x32xf32>
    %61 = arith.truncf %60 : vector<16x32xf32> to vector<16x32xbf16>
    %cst_28 = arith.constant dense<0.000000e+00> : vector<16x32xf32>
    %62 = tpu.matmul %61, %48, %cst_28 {dimension_numbers = #tpu.dot_dimension_numbers<[1], [0], [0], [1], [0, 0, 1, 1], [], []>} : vector<16x32xbf16>, vector<32x32xbf16>, vector<16x32xf32> -> vector<16x32xf32>
    %c5 = arith.constant 5 : index
    %c0_29 = arith.constant 0 : index
    %63 = vector.load %arg2[%c5, %c0_29] : memref<8x128xf32, #tpu.memory_space<vmem>>, vector<1x32xf32>
    %64 = vector.broadcast %63 : vector<1x32xf32> to vector<16x32xf32>
    %65 = arith.addf %62, %64 : vector<16x32xf32>
    %cst_30 = arith.constant 0.000000e+00 : f32
    %66 = vector.broadcast %cst_30 : f32 to vector<16x32xf32>
    %67 = arith.maximumf %65, %66 : vector<16x32xf32>
    %c16_31 = arith.constant 16 : index
    %c0_32 = arith.constant 0 : index
    %68 = vector.load %arg1[%c16_31, %c0_32] : memref<48x128xf32, #tpu.memory_space<vmem>>, vector<8x16xf32>
    %69 = arith.truncf %68 : vector<8x16xf32> to vector<8x16xbf16>
    %70 = arith.truncf %67 : vector<16x32xf32> to vector<16x32xbf16>
    %cst_33 = arith.constant dense<0.000000e+00> : vector<8x32xf32>
    %71 = tpu.matmul %69, %70, %cst_33 {dimension_numbers = #tpu.dot_dimension_numbers<[1], [0], [0], [1], [0, 0, 1, 1], [], []>} : vector<8x16xbf16>, vector<16x32xbf16>, vector<8x32xf32> -> vector<8x32xf32>
    %c24 = arith.constant 24 : index
    %c0_34 = arith.constant 0 : index
    %72 = vector.load %arg1[%c24, %c0_34] : memref<48x128xf32, #tpu.memory_space<vmem>>, vector<16x8xf32>
    %73 = vector.extract_strided_slice %72 {offsets = [0, 0], sizes = [16, 1], strides = [1, 1]} : vector<16x8xf32> to vector<16x1xf32>
    %cst_35 = arith.constant 0.000000e+00 : f32
    %74 = vector.broadcast %cst_35 : f32 to vector<16x1xf32>
    %75 = arith.cmpf ogt, %73, %74 : vector<16x1xf32>
    %cst_36 = arith.constant -1.000000e+30 : f32
    %76 = vector.shape_cast %75 : vector<16x1xi1> to vector<16x1xi1>
    %77 = vector.broadcast %76 : vector<16x1xi1> to vector<16x32xi1>
    %78 = vector.broadcast %cst_36 : f32 to vector<16x32xf32>
    %79 = arith.select %77, %67, %78 : vector<16x32xi1>, vector<16x32xf32>
    %cst_37 = arith.constant dense<0xFF800000> : vector<32xf32>
    %80 = vector.multi_reduction <maximumf>, %79, %cst_37 [0] : vector<16x32xf32> to vector<32xf32>
    %81 = vector.shape_cast %80 : vector<32xf32> to vector<1x32xf32>
    %82 = vector.extract_strided_slice %72 {offsets = [0, 1], sizes = [16, 1], strides = [1, 1]} : vector<16x8xf32> to vector<16x1xf32>
    %cst_38 = arith.constant 0.000000e+00 : f32
    %83 = vector.broadcast %cst_38 : f32 to vector<16x1xf32>
    %84 = arith.cmpf ogt, %82, %83 : vector<16x1xf32>
    %cst_39 = arith.constant -1.000000e+30 : f32
    %85 = vector.shape_cast %84 : vector<16x1xi1> to vector<16x1xi1>
    %86 = vector.broadcast %85 : vector<16x1xi1> to vector<16x32xi1>
    %87 = vector.broadcast %cst_39 : f32 to vector<16x32xf32>
    %88 = arith.select %86, %67, %87 : vector<16x32xi1>, vector<16x32xf32>
    %cst_40 = arith.constant dense<0xFF800000> : vector<32xf32>
    %89 = vector.multi_reduction <maximumf>, %88, %cst_40 [0] : vector<16x32xf32> to vector<32xf32>
    %90 = vector.shape_cast %89 : vector<32xf32> to vector<1x32xf32>
    %cst_41 = arith.constant 0.000000e+00 : f32
    %91 = vector.broadcast %cst_41 : f32 to vector<6x32xf32>
    %92 = tpu.concatenate %81, %90, %91 in 0 : vector<1x32xf32>, vector<1x32xf32>, vector<6x32xf32> -> vector<8x32xf32>
    %cst_42 = arith.constant 0.000000e+00 : f32
    %93 = vector.broadcast %cst_42 : f32 to vector<8x32xf32>
    %94 = arith.maximumf %92, %93 : vector<8x32xf32>
    %c112 = arith.constant 112 : index
    %c0_43 = arith.constant 0 : index
    %95 = vector.load %arg3[%c112, %c0_43] : memref<208x128xbf16, #tpu.memory_space<vmem>>, vector<32x32xbf16>
    %c144 = arith.constant 144 : index
    %c0_44 = arith.constant 0 : index
    %96 = vector.load %arg3[%c144, %c0_44] : memref<208x128xbf16, #tpu.memory_space<vmem>>, vector<32x32xbf16>
    %c176 = arith.constant 176 : index
    %c0_45 = arith.constant 0 : index
    %97 = vector.load %arg3[%c176, %c0_45] : memref<208x128xbf16, #tpu.memory_space<vmem>>, vector<32x128xbf16>
    %98 = arith.truncf %71 : vector<8x32xf32> to vector<8x32xbf16>
    %cst_46 = arith.constant dense<0.000000e+00> : vector<8x32xf32>
    %99 = tpu.matmul %98, %95, %cst_46 {dimension_numbers = #tpu.dot_dimension_numbers<[1], [0], [0], [1], [0, 0, 1, 1], [], []>} : vector<8x32xbf16>, vector<32x32xbf16>, vector<8x32xf32> -> vector<8x32xf32>
    %100 = arith.truncf %94 : vector<8x32xf32> to vector<8x32xbf16>
    %cst_47 = arith.constant dense<0.000000e+00> : vector<8x32xf32>
    %101 = tpu.matmul %100, %96, %cst_47 {dimension_numbers = #tpu.dot_dimension_numbers<[1], [0], [0], [1], [0, 0, 1, 1], [], []>} : vector<8x32xbf16>, vector<32x32xbf16>, vector<8x32xf32> -> vector<8x32xf32>
    %102 = arith.addf %99, %101 : vector<8x32xf32>
    %c6 = arith.constant 6 : index
    %c0_48 = arith.constant 0 : index
    %103 = vector.load %arg2[%c6, %c0_48] : memref<8x128xf32, #tpu.memory_space<vmem>>, vector<1x32xf32>
    %104 = vector.broadcast %103 : vector<1x32xf32> to vector<8x32xf32>
    %105 = arith.addf %102, %104 : vector<8x32xf32>
    %cst_49 = arith.constant 0.000000e+00 : f32
    %106 = vector.broadcast %cst_49 : f32 to vector<8x32xf32>
    %107 = arith.maximumf %105, %106 : vector<8x32xf32>
    %108 = arith.truncf %107 : vector<8x32xf32> to vector<8x32xbf16>
    %cst_50 = arith.constant dense<0.000000e+00> : vector<8x128xf32>
    %109 = tpu.matmul %108, %97, %cst_50 {dimension_numbers = #tpu.dot_dimension_numbers<[1], [0], [0], [1], [0, 0, 1, 1], [], []>} : vector<8x32xbf16>, vector<32x128xbf16>, vector<8x128xf32> -> vector<8x128xf32>
    %c7 = arith.constant 7 : index
    %c0_51 = arith.constant 0 : index
    %110 = vector.load %arg2[%c7, %c0_51] : memref<8x128xf32, #tpu.memory_space<vmem>>, vector<1x128xf32>
    %111 = vector.broadcast %110 : vector<1x128xf32> to vector<8x128xf32>
    %112 = arith.addf %109, %111 : vector<8x128xf32>
    %c0_52 = arith.constant 0 : index
    %c0_53 = arith.constant 0 : index
    %113 = vector.load %arg4[%c0_52, %c0_53] : memref<8x128xf32, #tpu.memory_space<vmem>>, vector<8x128xf32>
    tpu.vector_store %arg4[%c0_52, %c0_53], %112 {strides = array<i32>} : memref<8x128xf32, #tpu.memory_space<vmem>>, vector<8x128xf32>,
    %cst_54 = arith.constant dense<0xFF800000> : vector<8xf32>
    %114 = vector.multi_reduction <maximumf>, %112, %cst_54 [1] : vector<8x128xf32> to vector<8xf32>
    %115 = vector.shape_cast %114 : vector<8xf32> to vector<8x1xf32>
    %116 = vector.broadcast %115 : vector<8x1xf32> to vector<8x128xf32>
    %117 = arith.subf %112, %116 : vector<8x128xf32>
    %118 = math.exp %117 : vector<8x128xf32>
    %cst_55 = arith.constant dense<0.000000e+00> : vector<8xf32>
    %119 = vector.multi_reduction <add>, %118, %cst_55 [1] : vector<8x128xf32> to vector<8xf32>
    %120 = vector.shape_cast %119 : vector<8xf32> to vector<8x1xf32>
    %121 = math.log %120 : vector<8x1xf32>
    %122 = arith.addf %115, %121 : vector<8x1xf32>
    %c40 = arith.constant 40 : index
    %c0_56 = arith.constant 0 : index
    %123 = vector.load %arg1[%c40, %c0_56] : memref<48x128xf32, #tpu.memory_space<vmem>>, vector<8x128xf32>
    %124 = vector.broadcast %122 : vector<8x1xf32> to vector<8x128xf32>
    %125 = arith.subf %112, %124 : vector<8x128xf32>
    %126 = arith.mulf %123, %125 : vector<8x128xf32>
    %cst_57 = arith.constant dense<0.000000e+00> : vector<8xf32>
    %127 = vector.multi_reduction <add>, %126, %cst_57 [1] : vector<8x128xf32> to vector<8xf32>
    %128 = vector.shape_cast %127 : vector<8xf32> to vector<8x1xf32>
    %cst_58 = arith.constant 0.000000e+00 : f32
    %129 = vector.broadcast %cst_58 : f32 to vector<8x1xf32>
    %130 = arith.subf %129, %128 : vector<8x1xf32>
    %131 = vector.shape_cast %130 : vector<8x1xf32> to vector<1x8x1xf32>
    %cst_59 = arith.constant dense<0.000000e+00> : vector<1xf32>
    %132 = vector.multi_reduction <add>, %131, %cst_59 [1, 2] : vector<1x8x1xf32> to vector<1xf32>
    %133 = vector.shape_cast %132 : vector<1xf32> to vector<1x1x1xf32>
    %134 = vector.extract %133[0, 0, 0] : f32 from vector<1x1x1xf32>
    %cst_60 = arith.constant 5.000000e-01 : f32
    %135 = arith.mulf %134, %cst_60 : f32
    %c0_61 = arith.constant 0 : index
    %c0_62 = arith.constant 0 : index
    %136 = memref.load %arg5[%c0_61, %c0_62] : memref<1x1xf32, #tpu.memory_space<smem>>
    memref.store %135, %arg5[%c0_61, %c0_62] : memref<1x1xf32, #tpu.memory_space<smem>>
    return
  }
}

</mosaic_0001>

<llo_original>
// kernel: gnn_forward.1
$region0: #{gnn_forward.1}
  #allocation0 [shape = 'u32[]', space=smem, size = 0x4, offset = 0x4, fixed_abs, tag = 'smem constant byte address 0x4 - core index']
  #allocation1 [shape = 'u32[144,128]{1,0:T(1,128)}', space=vmem, size = 0x12000, scoped, tag = 'internal scratch']
  %s0 = inlined_call_operand.hbm [shape: bf16[16,16], index: 0, kind: input, shape index: {}]
  %s1 = inlined_call_operand.hbm [shape: f32[48,128], index: 1, kind: input, shape index: {}]
  %s2 = inlined_call_operand.hbm [shape: f32[8,128], index: 2, kind: input, shape index: {}]
  %s3 = inlined_call_operand.hbm [shape: bf16[208,128], index: 3, kind: input, shape index: {}]
  %s4 = inlined_call_operand.vmem [shape: f32[8,128], index: 4, kind: output, shape index: {0}]
  %s5 = inlined_call_operand.hbm [shape: f32[1,1], index: 5, kind: output, shape index: {1}]
  %6 = xla_tuple %s4, %s5
  %s7 = sld [smem:[#allocation0]]
  $region50: #{gnn_forward.1} parent=0
    _
  %s9 = ssub.s32 1, %s7
  %s10 = scalar_select 0, %s9, %s7
  $region1: #{gnn_forward.1} parent=0
    #allocation2 [shape = 'u8[4096]{0}', space=vmem, size = 0x1000, scoped, tag = 'input window, operand 0, single buffered']
    #allocation3 [shape = 's32[1]{0}', space=sflag, size = 0x4, scoped, tag = 'scoped memory for gnn_forward.1']
    #allocation4 [shape = 's32[1]{0}', space=sflag, size = 0x4, scoped, tag = 'scoped memory for gnn_forward.1']
    #allocation5 [shape = 'u8[24576]{0}', space=vmem, size = 0x6000, scoped, tag = 'input window, operand 1, single buffered']
    #allocation6 [shape = 's32[1]{0}', space=sflag, size = 0x4, scoped, tag = 'scoped memory for gnn_forward.1']
    #allocation7 [shape = 'u8[4096]{0}', space=vmem, size = 0x1000, scoped, tag = 'input window, operand 2, single buffered']
    #allocation8 [shape = 'u8[53248]{0}', space=vmem, size = 0xd000, scoped, tag = 'input window, operand 3, single buffered']
    #allocation9 [shape = 's32[1]{0}', space=sflag, size = 0x4, scoped, tag = 'scoped memory for gnn_forward.1']
    #allocation10 [shape = 'u8[512]{0}', space=smem, size = 0x200, scoped, tag = 'output window, operand 1, single buffered']
    %11 = vsyncpa [#allocation3], 0
    %12 = vsyncpa [#allocation6], 0
    %13 = vsyncpa [#allocation9], 0
    %14 = vsyncpa [#allocation4], 0
    // Predicated region
    $region2: #{gnn_forward.1} parent=1 // pred_check
      _
    $region3: #{gnn_forward.1} parent=1 // pred_check_branch
      %16 = sbr.rel (0) target = $region5
    $region4: #{gnn_forward.1} parent=1 // pred_region
      %s18 = ssub.s32 128, 128
      %19 = vsyncadd [#allocation3], %s18
      %s20 = sshll.u32 [#allocation2], 4
      %s21 = int_to_ptr.vmem [resolvable:$true] %s20
      %26 = dma.hbm_to_vmem [thread:$0]  %s0, 128, %s21, [#allocation3], 64, 64, 4
    $region5: #{gnn_forward.1} parent=1 // pred_fallthru
      _
    // Predicated region
    $region6: #{gnn_forward.1} parent=1 // pred_check
      _
    $region7: #{gnn_forward.1} parent=1 // pred_check_branch
      %28 = sbr.rel (0) target = $region9
    $region8: #{gnn_forward.1} parent=1 // pred_region
      %s30 = ssub.s32 768, 768
      %31 = vsyncadd [#allocation6], %s30
      %s32 = sshll.u32 [#allocation5], 4
      %s33 = int_to_ptr.vmem [resolvable:$true] %s32
      %38 = dma.hbm_to_vmem [thread:$0]  %s1, 768, %s33, [#allocation6], 128, 128, 8
    $region9: #{gnn_forward.1} parent=1 // pred_fallthru
      _
    // Predicated region
    $region10: #{gnn_forward.1} parent=1 // pred_check
      _
    $region11: #{gnn_forward.1} parent=1 // pred_check_branch
      %40 = sbr.rel (0) target = $region13
    $region12: #{gnn_forward.1} parent=1 // pred_region
      %s42 = ssub.s32 128, 128
      %43 = vsyncadd [#allocation6], %s42
      %s45 = sshll.u32 [#allocation7], 4
      %s46 = int_to_ptr.vmem [resolvable:$true] %s45
      %48 = dma.hbm_to_vmem [thread:$0]  %s2, 128, %s46, [#allocation6]
    $region13: #{gnn_forward.1} parent=1 // pred_fallthru
      _
    // Predicated region
    $region14: #{gnn_forward.1} parent=1 // pred_check
      _
    $region15: #{gnn_forward.1} parent=1 // pred_check_branch
      %50 = sbr.rel (0) target = $region17
    $region16: #{gnn_forward.1} parent=1 // pred_region
      %s52 = ssub.s32 1664, 1664
      %53 = vsyncadd [#allocation9], %s52
      %s54 = sshll.u32 [#allocation8], 4
      %s55 = int_to_ptr.vmem [resolvable:$true] %s54
      %60 = dma.hbm_to_vmem [thread:$0]  %s3, 1664, %s55, [#allocation9], 64, 64, 4
    $region17: #{gnn_forward.1} parent=1 // pred_fallthru
      _
    // Predicated region
    $region18: #{gnn_forward.1} parent=1 // pred_check
      _
    $region19: #{gnn_forward.1} parent=1 // pred_check_branch
      %62 = sbr.rel (0) target = $region21
    $region20: #{gnn_forward.1} parent=1 // pred_region
      %63 = dma.done [#allocation3], 128
    $region21: #{gnn_forward.1} parent=1 // pred_fallthru
      _
    // Predicated region
    $region22: #{gnn_forward.1} parent=1 // pred_check
      _
    $region23: #{gnn_forward.1} parent=1 // pred_check_branch
      %65 = sbr.rel (0) target = $region25
    $region24: #{gnn_forward.1} parent=1 // pred_region
      %66 = dma.done [#allocation6], 768
    $region25: #{gnn_forward.1} parent=1 // pred_fallthru
      _
    // Predicated region
    $region26: #{gnn_forward.1} parent=1 // pred_check
      _
    $region27: #{gnn_forward.1} parent=1 // pred_check_branch
      %68 = sbr.rel (0) target = $region29
    $region28: #{gnn_forward.1} parent=1 // pred_region
      %69 = dma.done [#allocation6], 128
    $region29: #{gnn_forward.1} parent=1 // pred_fallthru
      _
    // Predicated region
    $region30: #{gnn_forward.1} parent=1 // pred_check
      _
    $region31: #{gnn_forward.1} parent=1 // pred_check_branch
      %71 = sbr.rel (0) target = $region33
    $region32: #{gnn_forward.1} parent=1 // pred_region
      %72 = dma.done [#allocation9], 1664
    $region33: #{gnn_forward.1} parent=1 // pred_fallthru
      _
    %v74 = vld [vmem:[#allocation2] sm:$0xf]
    %v75 = vld [vmem:[#allocation2 + $0x4] sm:$0xf]
    %v76 = vld [vmem:[#allocation5] sm:$0xff]
    %v77 = vld [vmem:[#allocation5 + $0x8] sm:$0xff]
    %v78 = vld [vmem:[#allocation8] sm:$0xf]
    %v79 = vld [vmem:[#allocation8 + $0x4] sm:$0xf]
    %v80 = vld [vmem:[#allocation8 + $0x8] sm:$0xf]
    %v81 = vld [vmem:[#allocation8 + $0xc] sm:$0xf]
    %v82 = vld [vmem:[#allocation8 + $0x10] sm:$0xf]
    %v83 = vld [vmem:[#allocation8 + $0x14] sm:$0xf]
    %v84 = vpack.c.bf16 %v77, %v76
    %v87 = vunpack.c.l.b16 %v74
    %v88 = vunpack.c.l.b16 %v75
    %v89 = vpack.c.b16 %v88, %v87
    %vm90 = vcmask 130048
    %v92 = vsel %vm90, %v89, 0
    %94 = vmatprep.subr.bf16.mxu0 0
    %95 = vmatpush1.bf16.msra.mxu0 %v84
    %96 = vmatprep.subr.bf16.mxu0 0
    %97 = vmatpush1.bf16.msra.mxu0 0
    %98 = vmatprep.subr.bf16.mxu0 0
    %99 = vmatpush1.bf16.msra.mxu0 0
    %100 = vmatprep.subr.bf16.mxu0 0
    %101 = vmatpush1.bf16.msra.mxu0 0
    %102 = vmatprep.subr.bf16.mxu0 0
    %103 = vmatpush1.bf16.msra.mxu0 0
    %104 = vmatprep.subr.bf16.mxu0 0
    %105 = vmatpush1.bf16.msra.mxu0 0
    %106 = vmatprep.subr.bf16.mxu0 0
    %107 = vmatpush1.bf16.msra.mxu0 0
    %108 = vmatprep.subr.bf16.mxu0 0
    %109 = vmatpush1.bf16.msra.mxu0 0
    %110 = vmatprep.subr.bf16.mxu0 0
    %111 = vmatpush1.bf16.msra.mxu0 0
    %112 = vmatprep.subr.bf16.mxu0 0
    %113 = vmatpush1.bf16.msra.mxu0 0
    %114 = vmatprep.subr.bf16.mxu0 0
    %115 = vmatpush1.bf16.msra.mxu0 0
    %116 = vmatprep.subr.bf16.mxu0 0
    %117 = vmatpush1.bf16.msra.mxu0 0
    %118 = vmatprep.subr.bf16.mxu0 0
    %119 = vmatpush1.bf16.msra.mxu0 0
    %120 = vmatprep.subr.bf16.mxu0 0
    %121 = vmatpush1.bf16.msra.mxu0 0
    %122 = vmatprep.subr.bf16.mxu0 0
    %123 = vmatpush1.bf16.msra.mxu0 0
    %124 = vmatprep.subr.bf16.mxu0 0
    %125 = vmatpush1.bf16.msra.mxu0 0
    %126 = vmatprep.mubr.bf16.mxu0 0
    %127 = vmatmul.mubr.bf16.gmra.mrb[0].mxu0 %v92
    %v128 = vpop.f32.mrb[0].mxu0
    %v129 = vadd.f32 0.0, %v128
    %v130 = vpop.f32.mrb[0].mxu0
    %v131 = vpop.f32.mrb[0].mxu0
    %v132 = vadd.f32 0.0, %v131
    %v133 = vpop.f32.mrb[0].mxu0
    %134 = vdwg.mxu0
    %v135 = vadd.f32 %v76, %v129
    %v136 = vadd.f32 %v77, %v132
    %v137 = vpack.c.bf16 %v136, %v135
    %v138 = vld [vmem:[#allocation7] sm:$0x1]
    %v139 = vlaneseq
    %v140 = vshrl.u32 %v139, 7
    %v141 = vsub.s32 0, %v140
    %v142 = vrot.slane %v138, %v141
    %v145 = vunpack.c.l.b16 %v78
    %v146 = vunpack.c.l.b16 %v79
    %v147 = vpack.c.b16 %v146, %v145
    %v150 = vsel %vm90, %v137, 0
    %152 = vmatprep.subr.bf16.mxu0 0
    %153 = vmatpush1.bf16.msra.mxu0 %v147
    %154 = vmatprep.subr.bf16.mxu0 0
    %155 = vmatpush1.bf16.msra.mxu0 0
    %156 = vmatprep.subr.bf16.mxu0 0
    %157 = vmatpush1.bf16.msra.mxu0 0
    %158 = vmatprep.subr.bf16.mxu0 0
    %159 = vmatpush1.bf16.msra.mxu0 0
    %160 = vmatprep.subr.bf16.mxu0 0
    %161 = vmatpush1.bf16.msra.mxu0 0
    %162 = vmatprep.subr.bf16.mxu0 0
    %163 = vmatpush1.bf16.msra.mxu0 0
    %164 = vmatprep.subr.bf16.mxu0 0
    %165 = vmatpush1.bf16.msra.mxu0 0
    %166 = vmatprep.subr.bf16.mxu0 0
    %167 = vmatpush1.bf16.msra.mxu0 0
    %168 = vmatprep.subr.bf16.mxu0 0
    %169 = vmatpush1.bf16.msra.mxu0 0
    %170 = vmatprep.subr.bf16.mxu0 0
    %171 = vmatpush1.bf16.msra.mxu0 0
    %172 = vmatprep.subr.bf16.mxu0 0
    %173 = vmatpush1.bf16.msra.mxu0 0
    %174 = vmatprep.subr.bf16.mxu0 0
    %175 = vmatpush1.bf16.msra.mxu0 0
    %176 = vmatprep.subr.bf16.mxu0 0
    %177 = vmatpush1.bf16.msra.mxu0 0
    %178 = vmatprep.subr.bf16.mxu0 0
    %179 = vmatpush1.bf16.msra.mxu0 0
    %180 = vmatprep.subr.bf16.mxu0 0
    %181 = vmatpush1.bf16.msra.mxu0 0
    %182 = vmatprep.subr.bf16.mxu0 0
    %183 = vmatpush1.bf16.msra.mxu0 0
    %184 = vmatprep.mubr.bf16.mxu0 0
    %185 = vmatmul.mubr.bf16.gmra.mrb[0].mxu0 %v150
    %v186 = vpop.f32.mrb[0].mxu0
    %v187 = vadd.f32 %v142, %v186
    %v188 = vpop.f32.mrb[0].mxu0
    %v189 = vpop.f32.mrb[0].mxu0
    %v190 = vadd.f32 %v142, %v189
    %v191 = vpop.f32.mrb[0].mxu0
    %192 = vdwg.mxu0
    %v193 = vmax.f32 %v187, 0.0
    %v194 = vmax.f32 %v190, 0.0
    %v195 = vpack.c.bf16 %v194, %v193
    %v196 = vld [vmem:[#allocation7 + $0x1] sm:$0x1]
    %v197 = vlaneseq
    %v198 = vshrl.u32 %v197, 7
    %v199 = vsub.s32 0, %v198
    %v200 = vrot.slane %v196, %v199
    %v205 = vunpack.c.l.b16 %v80
    %v206 = vunpack.c.l.b16 %v81
    %v207 = vunpack.c.l.b16 %v82
    %v208 = vunpack.c.l.b16 %v83
    %v209 = vpack.c.b16 %v206, %v205
    %v210 = vpack.c.b16 %v208, %v207
    %vm213 = vcmask 261120
    %v215 = vsel %vm213, %v195, 0
    %217 = vmatprep.subr.bf16.mxu0 0
    %218 = vmatpush1.bf16.msra.mxu0 %v209
    %219 = vmatprep.subr.bf16.mxu0 0
    %220 = vmatpush1.bf16.msra.mxu0 %v210
    %221 = vmatprep.subr.bf16.mxu0 0
    %222 = vmatpush1.bf16.msra.mxu0 0
    %223 = vmatprep.subr.bf16.mxu0 0
    %224 = vmatpush1.bf16.msra.mxu0 0
    %225 = vmatprep.subr.bf16.mxu0 0
    %226 = vmatpush1.bf16.msra.mxu0 0
    %227 = vmatprep.subr.bf16.mxu0 0
    %228 = vmatpush1.bf16.msra.mxu0 0
    %229 = vmatprep.subr.bf16.mxu0 0
    %230 = vmatpush1.bf16.msra.mxu0 0
    %231 = vmatprep.subr.bf16.mxu0 0
    %232 = vmatpush1.bf16.msra.mxu0 0
    %233 = vmatprep.subr.bf16.mxu0 0
    %234 = vmatpush1.bf16.msra.mxu0 0
    %235 = vmatprep.subr.bf16.mxu0 0
    %236 = vmatpush1.bf16.msra.mxu0 0
    %237 = vmatprep.subr.bf16.mxu0 0
    %238 = vmatpush1.bf16.msra.mxu0 0
    %239 = vmatprep.subr.bf16.mxu0 0
    %240 = vmatpush1.bf16.msra.mxu0 0
    %241 = vmatprep.subr.bf16.mxu0 0
    %242 = vmatpush1.bf16.msra.mxu0 0
    %243 = vmatprep.subr.bf16.mxu0 0
    %244 = vmatpush1.bf16.msra.mxu0 0
    %245 = vmatprep.subr.bf16.mxu0 0
    %246 = vmatpush1.bf16.msra.mxu0 0
    %247 = vmatprep.subr.bf16.mxu0 0
    %248 = vmatpush1.bf16.msra.mxu0 0
    %249 = vmatprep.mubr.bf16.mxu0 0
    %250 = vmatmul.mubr.bf16.gmra.mrb[0].mxu0 %v215
    %v251 = vpop.f32.mrb[0].mxu0
    %v252 = vadd.f32 %v200, %v251
    %v253 = vpop.f32.mrb[0].mxu0
    %v254 = vpop.f32.mrb[0].mxu0
    %v255 = vadd.f32 %v200, %v254
    %v256 = vpop.f32.mrb[0].mxu0
    %257 = vdwg.mxu0
    %v258 = vmax.f32 %v252, 0.0
    %v259 = vmax.f32 %v255, 0.0
    %v260 = vsel %vm213, %v258, 0.0
    %v261 = vsel %vm213, %v259, 0.0
    %v262 = vadd.f32 %v260, %v261
    %v263 = vrot.slane %v262, 4
    %v264 = vadd.f32 %v262, %v263
    %v265 = vrot.slane %v264, 2
    %v266 = vadd.f32 %v264, %v265
    %v267 = vrot.slane %v266, 1
    %v268 = vadd.f32 %v266, %v267
    %v269 = vrcp.pop 16.0
    %v270 = vmul.f32 %v268, %v269
    %v271 = vsub.f32 %v258, %v270
    %v272 = vsub.f32 %v259, %v270
    %v273 = vmul.f32 %v271, %v271
    %v274 = vmul.f32 %v272, %v272
    %v275 = vsel %vm213, %v273, 0.0
    %v276 = vsel %vm213, %v274, 0.0
    %v277 = vadd.f32 %v275, %v276
    %v278 = vrot.slane %v277, 4
    %v279 = vadd.f32 %v277, %v278
    %v280 = vrot.slane %v279, 2
    %v281 = vadd.f32 %v279, %v280
    %v282 = vrot.slane %v281, 1
    %v283 = vadd.f32 %v281, %v282
    %v284 = vmul.f32 %v283, %v269
    %v285 = vld [vmem:[#allocation7 + $0x2] sm:$0x1]
    %v286 = vlaneseq
    %v287 = vshrl.u32 %v286, 7
    %v288 = vsub.s32 0, %v287
    %v289 = vrot.slane %v285, %v288
    %v290 = vmul.f32 %v289, %v271
    %v291 = vmul.f32 %v289, %v272
    %v292 = vadd.f32 %v284, 1e-05
    %v293 = vrsqrt.pop %v292
    %v294 = vmul.f32 %v290, %v293
    %v295 = vmul.f32 %v291, %v293
    %v296 = vld [vmem:[#allocation7 + $0x3] sm:$0x1]
    %v297 = vlaneseq
    %v298 = vshrl.u32 %v297, 7
    %v299 = vsub.s32 0, %v298
    %v300 = vrot.slane %v296, %v299
    %v301 = vadd.f32 %v294, %v300
    %v302 = vadd.f32 %v295, %v300
    %v303 = vld [vmem:[#allocation8 + $0x18] sm:$0xf]
    %v304 = vld [vmem:[#allocation8 + $0x1c] sm:$0xf]
    %v305 = vld [vmem:[#allocation8 + $0x20] sm:$0xf]
    %v306 = vld [vmem:[#allocation8 + $0x24] sm:$0xf]
    %v307 = vld [vmem:[#allocation8 + $0x28] sm:$0xf]
    %v308 = vld [vmem:[#allocation8 + $0x2c] sm:$0xf]
    %v309 = vld [vmem:[#allocation8 + $0x30] sm:$0xf]
    %v310 = vld [vmem:[#allocation8 + $0x34] sm:$0xf]
    %v311 = vpack.c.bf16 %v302, %v301
    %312 = vmatprep.subr.bf16.mxu0 0
    %313 = vmatpush1.bf16.msra.mxu0 %v311
    %314 = vmatprep.subr.bf16.mxu0 0
    %315 = vmatpush1.bf16.msra.mxu0 0
    %316 = vmatprep.subr.bf16.mxu0 0
    %317 = vmatpush1.bf16.msra.mxu0 0
    %318 = vmatprep.subr.bf16.mxu0 0
    %319 = vmatpush1.bf16.msra.mxu0 0
    %320 = vmatprep.subr.bf16.mxu0 0
    %321 = vmatpush1.bf16.msra.mxu0 0
    %322 = vmatprep.subr.bf16.mxu0 0
    %323 = vmatpush1.bf16.msra.mxu0 0
    %324 = vmatprep.subr.bf16.mxu0 0
    %325 = vmatpush1.bf16.msra.mxu0 0
    %326 = vmatprep.subr.bf16.mxu0 0
    %327 = vmatpush1.bf16.msra.mxu0 0
    %328 = vmatprep.subr.bf16.mxu0 0
    %329 = vmatpush1.bf16.msra.mxu0 0
    %330 = vmatprep.subr.bf16.mxu0 0
    %331 = vmatpush1.bf16.msra.mxu0 0
    %332 = vmatprep.subr.bf16.mxu0 0
    %333 = vmatpush1.bf16.msra.mxu0 0
    %334 = vmatprep.subr.bf16.mxu0 0
    %335 = vmatpush1.bf16.msra.mxu0 0
    %336 = vmatprep.subr.bf16.mxu0 0
    %337 = vmatpush1.bf16.msra.mxu0 0
    %338 = vmatprep.subr.bf16.mxu0 0
    %339 = vmatpush1.bf16.msra.mxu0 0
    %340 = vmatprep.subr.bf16.mxu0 0
    %341 = vmatpush1.bf16.msra.mxu0 0
    %342 = vmatprep.subr.bf16.mxu0 0
    %343 = vmatpush1.bf16.msra.mxu0 0
    %344 = vmatprep.mubr.bf16.mxu0 0
    %345 = vmatmul.mubr.bf16.gmra.mrb[0].mxu0 %v92
    %v346 = vpop.f32.mrb[0].mxu0
    %v347 = vadd.f32 0.0, %v346
    %v348 = vpop.f32.mrb[0].mxu0
    %v349 = vpop.f32.mrb[0].mxu0
    %v350 = vadd.f32 0.0, %v349
    %v351 = vpop.f32.mrb[0].mxu0
    %352 = vdwg.mxu0
    %v353 = vadd.f32 %v301, %v347
    %v354 = vadd.f32 %v302, %v350
    %v355 = vpack.c.bf16 %v354, %v353
    %v356 = vld [vmem:[#allocation7 + $0x4] sm:$0x1]
    %v357 = vlaneseq
    %v358 = vshrl.u32 %v357, 7
    %v359 = vsub.s32 0, %v358
    %v360 = vrot.slane %v356, %v359
    %v365 = vunpack.c.l.b16 %v303
    %v366 = vunpack.c.l.b16 %v304
    %v367 = vunpack.c.l.b16 %v305
    %v368 = vunpack.c.l.b16 %v306
    %v369 = vpack.c.b16 %v366, %v365
    %v370 = vpack.c.b16 %v368, %v367
    %v374 = vsel %vm213, %v355, 0
    %376 = vmatprep.subr.bf16.mxu0 0
    %377 = vmatpush1.bf16.msra.mxu0 %v369
    %378 = vmatprep.subr.bf16.mxu0 0
    %379 = vmatpush1.bf16.msra.mxu0 %v370
    %380 = vmatprep.subr.bf16.mxu0 0
    %381 = vmatpush1.bf16.msra.mxu0 0
    %382 = vmatprep.subr.bf16.mxu0 0
    %383 = vmatpush1.bf16.msra.mxu0 0
    %384 = vmatprep.subr.bf16.mxu0 0
    %385 = vmatpush1.bf16.msra.mxu0 0
    %386 = vmatprep.subr.bf16.mxu0 0
    %387 = vmatpush1.bf16.msra.mxu0 0
    %388 = vmatprep.subr.bf16.mxu0 0
    %389 = vmatpush1.bf16.msra.mxu0 0
    %390 = vmatprep.subr.bf16.mxu0 0
    %391 = vmatpush1.bf16.msra.mxu0 0
    %392 = vmatprep.subr.bf16.mxu0 0
    %393 = vmatpush1.bf16.msra.mxu0 0
    %394 = vmatprep.subr.bf16.mxu0 0
    %395 = vmatpush1.bf16.msra.mxu0 0
    %396 = vmatprep.subr.bf16.mxu0 0
    %397 = vmatpush1.bf16.msra.mxu0 0
    %398 = vmatprep.subr.bf16.mxu0 0
    %399 = vmatpush1.bf16.msra.mxu0 0
    %400 = vmatprep.subr.bf16.mxu0 0
    %401 = vmatpush1.bf16.msra.mxu0 0
    %402 = vmatprep.subr.bf16.mxu0 0
    %403 = vmatpush1.bf16.msra.mxu0 0
    %404 = vmatprep.subr.bf16.mxu0 0
    %405 = vmatpush1.bf16.msra.mxu0 0
    %406 = vmatprep.subr.bf16.mxu0 0
    %407 = vmatpush1.bf16.msra.mxu0 0
    %408 = vmatprep.mubr.bf16.mxu0 0
    %409 = vmatmul.mubr.bf16.gmra.mrb[0].mxu0 %v374
    %v410 = vpop.f32.mrb[0].mxu0
    %v411 = vadd.f32 %v360, %v410
    %v412 = vpop.f32.mrb[0].mxu0
    %v413 = vpop.f32.mrb[0].mxu0
    %v414 = vadd.f32 %v360, %v413
    %v415 = vpop.f32.mrb[0].mxu0
    %416 = vdwg.mxu0
    %v417 = vmax.f32 %v411, 0.0
    %v418 = vmax.f32 %v414, 0.0
    %v419 = vpack.c.bf16 %v418, %v417
    %v420 = vld [vmem:[#allocation7 + $0x5] sm:$0x1]
    %v421 = vlaneseq
    %v422 = vshrl.u32 %v421, 7
    %v423 = vsub.s32 0, %v422
    %v424 = vrot.slane %v420, %v423
    %v429 = vunpack.c.l.b16 %v307
    %v430 = vunpack.c.l.b16 %v308
    %v431 = vunpack.c.l.b16 %v309
    %v432 = vunpack.c.l.b16 %v310
    %v433 = vpack.c.b16 %v430, %v429
    %v434 = vpack.c.b16 %v432, %v431
    %v438 = vsel %vm213, %v419, 0
    %440 = vmatprep.subr.bf16.mxu0 0
    %441 = vmatpush1.bf16.msra.mxu0 %v433
    %442 = vmatprep.subr.bf16.mxu0 0
    %443 = vmatpush1.bf16.msra.mxu0 %v434
    %444 = vmatprep.subr.bf16.mxu0 0
    %445 = vmatpush1.bf16.msra.mxu0 0
    %446 = vmatprep.subr.bf16.mxu0 0
    %447 = vmatpush1.bf16.msra.mxu0 0
    %448 = vmatprep.subr.bf16.mxu0 0
    %449 = vmatpush1.bf16.msra.mxu0 0
    %450 = vmatprep.subr.bf16.mxu0 0
    %451 = vmatpush1.bf16.msra.mxu0 0
    %452 = vmatprep.subr.bf16.mxu0 0
    %453 = vmatpush1.bf16.msra.mxu0 0
    %454 = vmatprep.subr.bf16.mxu0 0
    %455 = vmatpush1.bf16.msra.mxu0 0
    %456 = vmatprep.subr.bf16.mxu0 0
    %457 = vmatpush1.bf16.msra.mxu0 0
    %458 = vmatprep.subr.bf16.mxu0 0
    %459 = vmatpush1.bf16.msra.mxu0 0
    %460 = vmatprep.subr.bf16.mxu0 0
    %461 = vmatpush1.bf16.msra.mxu0 0
    %462 = vmatprep.subr.bf16.mxu0 0
    %463 = vmatpush1.bf16.msra.mxu0 0
    %464 = vmatprep.subr.bf16.mxu0 0
    %465 = vmatpush1.bf16.msra.mxu0 0
    %466 = vmatprep.subr.bf16.mxu0 0
    %467 = vmatpush1.bf16.msra.mxu0 0
    %468 = vmatprep.subr.bf16.mxu0 0
    %469 = vmatpush1.bf16.msra.mxu0 0
    %470 = vmatprep.subr.bf16.mxu0 0
    %471 = vmatpush1.bf16.msra.mxu0 0
    %472 = vmatprep.mubr.bf16.mxu0 0
    %473 = vmatmul.mubr.bf16.gmra.mrb[0].mxu0 %v438
    %v474 = vpop.f32.mrb[0].mxu0
    %v475 = vadd.f32 %v424, %v474
    %v476 = vpop.f32.mrb[0].mxu0
    %v477 = vpop.f32.mrb[0].mxu0
    %v478 = vadd.f32 %v424, %v477
    %v479 = vpop.f32.mrb[0].mxu0
    %480 = vdwg.mxu0
    %v481 = vmax.f32 %v475, 0.0
    %v482 = vmax.f32 %v478, 0.0
    %v483 = vld [vmem:[#allocation5 + $0x10] sm:$0xff]
    %v484 = vpack.c.bf16 %v483, %v483
    %v485 = vpack.c.bf16 %v482, %v481
    %v487 = vsel %vm90, %v484, 0
    %489 = vmatprep.subr.bf16.mxu0 0
    %490 = vmatpush1.bf16.msra.mxu0 %v485
    %491 = vmatprep.subr.bf16.mxu0 0
    %492 = vmatpush1.bf16.msra.mxu0 0
    %493 = vmatprep.subr.bf16.mxu0 0
    %494 = vmatpush1.bf16.msra.mxu0 0
    %495 = vmatprep.subr.bf16.mxu0 0
    %496 = vmatpush1.bf16.msra.mxu0 0
    %497 = vmatprep.subr.bf16.mxu0 0
    %498 = vmatpush1.bf16.msra.mxu0 0
    %499 = vmatprep.subr.bf16.mxu0 0
    %500 = vmatpush1.bf16.msra.mxu0 0
    %501 = vmatprep.subr.bf16.mxu0 0
    %502 = vmatpush1.bf16.msra.mxu0 0
    %503 = vmatprep.subr.bf16.mxu0 0
    %504 = vmatpush1.bf16.msra.mxu0 0
    %505 = vmatprep.subr.bf16.mxu0 0
    %506 = vmatpush1.bf16.msra.mxu0 0
    %507 = vmatprep.subr.bf16.mxu0 0
    %508 = vmatpush1.bf16.msra.mxu0 0
    %509 = vmatprep.subr.bf16.mxu0 0
    %510 = vmatpush1.bf16.msra.mxu0 0
    %511 = vmatprep.subr.bf16.mxu0 0
    %512 = vmatpush1.bf16.msra.mxu0 0
    %513 = vmatprep.subr.bf16.mxu0 0
    %514 = vmatpush1.bf16.msra.mxu0 0
    %515 = vmatprep.subr.bf16.mxu0 0
    %516 = vmatpush1.bf16.msra.mxu0 0
    %517 = vmatprep.subr.bf16.mxu0 0
    %518 = vmatpush1.bf16.msra.mxu0 0
    %519 = vmatprep.subr.bf16.mxu0 0
    %520 = vmatpush1.bf16.msra.mxu0 0
    %521 = vmatprep.mubr.bf16.mxu0 0
    %522 = vmatmul.mubr.bf16.gmra.mrb[0].mxu0 %v487
    %v523 = vpop.f32.mrb[0].mxu0
    %v524 = vadd.f32 0.0, %v523
    %v525 = vpop.f32.mrb[0].mxu0
    %v526 = vpop.f32.mrb[0].mxu0
    %v527 = vpop.f32.mrb[0].mxu0
    %528 = vdwg.mxu0
    %v529 = vld [vmem:[#allocation5 + $0x18] sm:$0xff]
    %v530 = vld [vmem:[#allocation5 + $0x20] sm:$0xff]
    %vm531 = vcmp.gt.f32.partialorder %v529, 0.0
    %vm532 = vcmp.gt.f32.partialorder %v530, 0.0
    %v533 = vsel %vm531, 1, 0
    %v534 = vsel %vm532, 1, 0
    %535 = vset.pattern.permute.xlu0 0
    %536 = vperm.xlu0 %535, %v533
    %v537 = vpop.permute.xlu0 %536
    %538 = vset.pattern.permute.xlu0 0
    %539 = vperm.xlu0 %538, %v534
    %v540 = vpop.permute.xlu0 %539
    %vm541 = vcmp.eq.s32.totalorder %v537, 1
    %vm542 = vcmp.eq.s32.totalorder %v540, 1
    %v543 = vsel %vm541, %v481, -1e+30
    %v544 = vsel %vm542, %v482, -1e+30
    %v545 = vsel %vm213, %v543, -inf
    %v546 = vsel %vm213, %v544, -inf
    %v547 = vmax.f32 %v545, %v546
    %v548 = vrot.slane %v547, 4
    %v549 = vmax.f32 %v547, %v548
    %v550 = vrot.slane %v549, 2
    %v551 = vmax.f32 %v549, %v550
    %v552 = vrot.slane %v551, 1
    %v553 = vmax.f32 %v551, %v552
    %554 = vset.pattern.permute.xlu0 1
    %555 = vperm.xlu0 %554, %v533
    %v556 = vpop.permute.xlu0 %555
    %557 = vset.pattern.permute.xlu0 1
    %558 = vperm.xlu0 %557, %v534
    %v559 = vpop.permute.xlu0 %558
    %vm560 = vcmp.eq.s32.totalorder %v556, 1
    %vm561 = vcmp.eq.s32.totalorder %v559, 1
    %v562 = vsel %vm560, %v481, -1e+30
    %v563 = vsel %vm561, %v482, -1e+30
    %v564 = vsel %vm213, %v562, -inf
    %v565 = vsel %vm213, %v563, -inf
    %v566 = vmax.f32 %v564, %v565
    %v567 = vrot.slane %v566, 4
    %v568 = vmax.f32 %v566, %v567
    %v569 = vrot.slane %v568, 2
    %v570 = vmax.f32 %v568, %v569
    %v571 = vrot.slane %v570, 1
    %v572 = vmax.f32 %v570, %v571
    %vm573 = vcmask 1040384
    %v574 = vsel %vm573, %v553, %v572
    %vm575 = vcmask 1041408
    %v576 = vsel %vm575, %v574, 0.0
    %v577 = vmax.f32 %v576, 0.0
    %v578 = vld [vmem:[#allocation8 + $0x38] sm:$0xf]
    %v579 = vld [vmem:[#allocation8 + $0x3c] sm:$0xf]
    %v580 = vld [vmem:[#allocation8 + $0x40] sm:$0xf]
    %v581 = vld [vmem:[#allocation8 + $0x44] sm:$0xf]
    %v582 = vld [vmem:[#allocation8 + $0x48] sm:$0xf]
    %v583 = vld [vmem:[#allocation8 + $0x4c] sm:$0xf]
    %v584 = vld [vmem:[#allocation8 + $0x50] sm:$0xf]
    %v585 = vld [vmem:[#allocation8 + $0x54] sm:$0xf]
    %v586 = vld [vmem:[#allocation8 + $0x58] sm:$0xf]
    %v587 = vld [vmem:[#allocation8 + $0x5c] sm:$0xf]
    %v588 = vld [vmem:[#allocation8 + $0x60] sm:$0xf]
    %v589 = vld [vmem:[#allocation8 + $0x64] sm:$0xf]
    %v590 = vpack.c.bf16 %v524, %v524
    %v591 = vpack.c.bf16 %v577, %v577
    %v596 = vunpack.c.l.b16 %v582
    %v597 = vunpack.c.l.b16 %v583
    %v598 = vunpack.c.l.b16 %v584
    %v599 = vunpack.c.l.b16 %v585
    %v600 = vpack.c.b16 %v597, %v596
    %v601 = vpack.c.b16 %v599, %v598
    %v605 = vsel %vm213, %v591, 0
    %607 = vmatprep.subr.bf16.mxu0 0
    %608 = vmatpush1.bf16.msra.mxu0 %v600
    %609 = vmatprep.subr.bf16.mxu0 0
    %610 = vmatpush1.bf16.msra.mxu0 %v601
    %611 = vmatprep.subr.bf16.mxu0 0
    %612 = vmatpush1.bf16.msra.mxu0 0
    %613 = vmatprep.subr.bf16.mxu0 0
    %614 = vmatpush1.bf16.msra.mxu0 0
    %615 = vmatprep.subr.bf16.mxu0 0
    %616 = vmatpush1.bf16.msra.mxu0 0
    %617 = vmatprep.subr.bf16.mxu0 0
    %618 = vmatpush1.bf16.msra.mxu0 0
    %619 = vmatprep.subr.bf16.mxu0 0
    %620 = vmatpush1.bf16.msra.mxu0 0
    %621 = vmatprep.subr.bf16.mxu0 0
    %622 = vmatpush1.bf16.msra.mxu0 0
    %623 = vmatprep.subr.bf16.mxu0 0
    %624 = vmatpush1.bf16.msra.mxu0 0
    %625 = vmatprep.subr.bf16.mxu0 0
    %626 = vmatpush1.bf16.msra.mxu0 0
    %627 = vmatprep.subr.bf16.mxu0 0
    %628 = vmatpush1.bf16.msra.mxu0 0
    %629 = vmatprep.subr.bf16.mxu0 0
    %630 = vmatpush1.bf16.msra.mxu0 0
    %631 = vmatprep.subr.bf16.mxu0 0
    %632 = vmatpush1.bf16.msra.mxu0 0
    %633 = vmatprep.subr.bf16.mxu0 0
    %634 = vmatpush1.bf16.msra.mxu0 0
    %635 = vmatprep.subr.bf16.mxu0 0
    %636 = vmatpush1.bf16.msra.mxu0 0
    %637 = vmatprep.subr.bf16.mxu0 0
    %638 = vmatpush1.bf16.msra.mxu0 0
    %639 = vmatprep.mubr.bf16.mxu0 0
    %640 = vmatmul.mubr.bf16.gmra.mrb[0].mxu0 %v605
    %v641 = vpop.f32.mrb[0].mxu0
    %v642 = vadd.f32 0.0, %v641
    %v643 = vpop.f32.mrb[0].mxu0
    %v644 = vpop.f32.mrb[0].mxu0
    %v645 = vpop.f32.mrb[0].mxu0
    %646 = vdwg.mxu0
    %v651 = vunpack.c.l.b16 %v578
    %v652 = vunpack.c.l.b16 %v579
    %v653 = vunpack.c.l.b16 %v580
    %v654 = vunpack.c.l.b16 %v581
    %v655 = vpack.c.b16 %v652, %v651
    %v656 = vpack.c.b16 %v654, %v653
    %v660 = vsel %vm213, %v590, 0
    %662 = vmatprep.subr.bf16.mxu0 0
    %663 = vmatpush1.bf16.msra.mxu0 %v655
    %664 = vmatprep.subr.bf16.mxu0 0
    %665 = vmatpush1.bf16.msra.mxu0 %v656
    %666 = vmatprep.subr.bf16.mxu0 0
    %667 = vmatpush1.bf16.msra.mxu0 0
    %668 = vmatprep.subr.bf16.mxu0 0
    %669 = vmatpush1.bf16.msra.mxu0 0
    %670 = vmatprep.subr.bf16.mxu0 0
    %671 = vmatpush1.bf16.msra.mxu0 0
    %672 = vmatprep.subr.bf16.mxu0 0
    %673 = vmatpush1.bf16.msra.mxu0 0
    %674 = vmatprep.subr.bf16.mxu0 0
    %675 = vmatpush1.bf16.msra.mxu0 0
    %676 = vmatprep.subr.bf16.mxu0 0
    %677 = vmatpush1.bf16.msra.mxu0 0
    %678 = vmatprep.subr.bf16.mxu0 0
    %679 = vmatpush1.bf16.msra.mxu0 0
    %680 = vmatprep.subr.bf16.mxu0 0
    %681 = vmatpush1.bf16.msra.mxu0 0
    %682 = vmatprep.subr.bf16.mxu0 0
    %683 = vmatpush1.bf16.msra.mxu0 0
    %684 = vmatprep.subr.bf16.mxu0 0
    %685 = vmatpush1.bf16.msra.mxu0 0
    %686 = vmatprep.subr.bf16.mxu0 0
    %687 = vmatpush1.bf16.msra.mxu0 0
    %688 = vmatprep.subr.bf16.mxu0 0
    %689 = vmatpush1.bf16.msra.mxu0 0
    %690 = vmatprep.subr.bf16.mxu0 0
    %691 = vmatpush1.bf16.msra.mxu0 0
    %692 = vmatprep.subr.bf16.mxu0 0
    %693 = vmatpush1.bf16.msra.mxu0 0
    %694 = vmatprep.mubr.bf16.mxu0 0
    %695 = vmatmul.mubr.bf16.gmra.mrb[0].mxu0 %v660
    %v696 = vpop.f32.mrb[0].mxu0
    %v697 = vadd.f32 %v642, %v696
    %v698 = vpop.f32.mrb[0].mxu0
    %v699 = vpop.f32.mrb[0].mxu0
    %v700 = vpop.f32.mrb[0].mxu0
    %701 = vdwg.mxu0
    %v702 = vld [vmem:[#allocation7 + $0x6] sm:$0x1]
    %v703 = vlaneseq
    %v704 = vshrl.u32 %v703, 7
    %v705 = vsub.s32 0, %v704
    %v706 = vrot.slane %v702, %v705
    %v707 = vadd.f32 %v697, %v706
    %v708 = vmax.f32 %v707, 0.0
    %v709 = vpack.c.bf16 %v708, %v708
    %v710 = vld [vmem:[#allocation7 + $0x7] sm:$0x1]
    %v711 = vlaneseq
    %v712 = vshrl.u32 %v711, 7
    %v713 = vsub.s32 0, %v712
    %v714 = vrot.slane %v710, %v713
    %v719 = vunpack.c.l.b16 %v586
    %v720 = vunpack.c.l.b16 %v587
    %v721 = vunpack.c.l.b16 %v588
    %v722 = vunpack.c.l.b16 %v589
    %v723 = vpack.c.b16 %v720, %v719
    %v724 = vpack.c.b16 %v722, %v721
    %v728 = vsel %vm213, %v709, 0
    %730 = vmatprep.subr.bf16.mxu0 0
    %731 = vmatpush1.bf16.msra.mxu0 %v723
    %732 = vmatprep.subr.bf16.mxu0 0
    %733 = vmatpush1.bf16.msra.mxu0 %v724
    %734 = vmatprep.subr.bf16.mxu0 0
    %735 = vmatpush1.bf16.msra.mxu0 0
    %736 = vmatprep.subr.bf16.mxu0 0
    %737 = vmatpush1.bf16.msra.mxu0 0
    %738 = vmatprep.subr.bf16.mxu0 0
    %739 = vmatpush1.bf16.msra.mxu0 0
    %740 = vmatprep.subr.bf16.mxu0 0
    %741 = vmatpush1.bf16.msra.mxu0 0
    %742 = vmatprep.subr.bf16.mxu0 0
    %743 = vmatpush1.bf16.msra.mxu0 0
    %744 = vmatprep.subr.bf16.mxu0 0
    %745 = vmatpush1.bf16.msra.mxu0 0
    %746 = vmatprep.subr.bf16.mxu0 0
    %747 = vmatpush1.bf16.msra.mxu0 0
    %748 = vmatprep.subr.bf16.mxu0 0
    %749 = vmatpush1.bf16.msra.mxu0 0
    %750 = vmatprep.subr.bf16.mxu0 0
    %751 = vmatpush1.bf16.msra.mxu0 0
    %752 = vmatprep.subr.bf16.mxu0 0
    %753 = vmatpush1.bf16.msra.mxu0 0
    %754 = vmatprep.subr.bf16.mxu0 0
    %755 = vmatpush1.bf16.msra.mxu0 0
    %756 = vmatprep.subr.bf16.mxu0 0
    %757 = vmatpush1.bf16.msra.mxu0 0
    %758 = vmatprep.subr.bf16.mxu0 0
    %759 = vmatpush1.bf16.msra.mxu0 0
    %760 = vmatprep.subr.bf16.mxu0 0
    %761 = vmatpush1.bf16.msra.mxu0 0
    %762 = vmatprep.mubr.bf16.mxu0 0
    %763 = vmatmul.mubr.bf16.gmra.mrb[0].mxu0 %v728
    %v764 = vpop.f32.mrb[0].mxu0
    %v765 = vadd.f32 %v714, %v764
    %v766 = vpop.f32.mrb[0].mxu0
    %v767 = vpop.f32.mrb[0].mxu0
    %v768 = vpop.f32.mrb[0].mxu0
    %769 = vdwg.mxu0
    %770 = vst [vmem:[%s4] sm:$0xff] %v765
    %771 = vmax.xlane.f32.xlu0 %v765
    %v772 = vpop.xlane.xlu0 %771
    %v773 = vsub.f32 %v765, %v772
    %v774 = vmul.f32 %v773, 1.442695
    %v775 = vpow.pop %v774
    %776 = vadd.xlane.f32.xlu0 %v775
    %v777 = vpop.xlane.xlu0 %776
    %v778 = vlog2.pop %v777
    %v779 = vmul.f32 %v778, 0.6931472
    %v780 = vadd.f32 %v772, %v779
    %v781 = vld [vmem:[#allocation5 + $0x28] sm:$0xff]
    %v782 = vsub.f32 %v765, %v780
    %v783 = vmul.f32 %v781, %v782
    %784 = vadd.xlane.f32.xlu0 %v783
    %v785 = vpop.xlane.xlu0 %784
    %v786 = vsub.f32 0.0, %v785
    %vm787 = vcmask 7168
    %v788 = vsel %vm787, %v786, 0.0
    %789 = vadd.xlane.f32.xlu0 %v788
    %v790 = vpop.xlane.xlu0 %789
    %v791 = vrot.slane %v790, 4
    %v792 = vadd.f32 %v790, %v791
    %v793 = vrot.slane %v792, 2
    %v794 = vadd.f32 %v792, %v793
    %v795 = vrot.slane %v794, 1
    %v796 = vadd.f32 %v794, %v795
    %s797 = vtos %v796
    %s798 = smul.f32 %s797, 0.5
    %s799 = scalar_lea.smem [#allocation10], 0
    %800 = sst [smem:[%s799]] %s798
    // Predicated region
    $region34: #{gnn_forward.1} parent=1 // pred_check
      _
    $region35: #{gnn_forward.1} parent=1 // pred_check_branch
      %802 = sbr.rel (0) target = $region37
    $region36: #{gnn_forward.1} parent=1 // pred_region
      _
    $region37: #{gnn_forward.1} parent=1 // pred_fallthru
      _
    // Predicated region
    $region38: #{gnn_forward.1} parent=1 // pred_check
      _
    $region39: #{gnn_forward.1} parent=1 // pred_check_branch
      %804 = sbr.rel (0) target = $region41
    $region40: #{gnn_forward.1} parent=1 // pred_region
      %s806 = ssub.s32 16, 16
      %807 = vsyncadd [#allocation4], %s806
      %810 = dma.smem_to_hbm [#allocation10], 16, %s5, [#allocation4]
    $region41: #{gnn_forward.1} parent=1 // pred_fallthru
      _
    // Predicated region
    $region42: #{gnn_forward.1} parent=1 // pred_check
      _
    $region43: #{gnn_forward.1} parent=1 // pred_check_branch
      %812 = sbr.rel (0) target = $region45
    $region44: #{gnn_forward.1} parent=1 // pred_region
      _
    $region45: #{gnn_forward.1} parent=1 // pred_fallthru
      _
    // Predicated region
    $region46: #{gnn_forward.1} parent=1 // pred_check
      _
    $region47: #{gnn_forward.1} parent=1 // pred_check_branch
      %814 = sbr.rel (0) target = $region49
    $region48: #{gnn_forward.1} parent=1 // pred_region
      %815 = dma.done [#allocation4], 16
    $region49: #{gnn_forward.1} parent=1 // pred_fallthru
      _
    %816 = sfence
    %817 = vsyncpa [#allocation3], 1
    %818 = vsyncpa [#allocation6], 1
    %819 = vsyncpa [#allocation9], 1
    %820 = vsyncpa [#allocation4], 1

</llo_original>
